<compile_context>
chip_gen: v7x
topology: tpu7x:2x2x1
jax: 0.10.0
libtpu: 0.0.40
codegen_flags: <defaults>
</compile_context>

<pallas_src>
import jax
import jax.numpy as jnp
from jax import lax
from jax.experimental import pallas as pl
from jax.experimental.pallas import tpu as pltpu

_LANE = 128
_SUBLANE = 8


def _round_up(x, m):
    return (x + m - 1) // m * m


# ---------------------------------------------------------------------------
# Path A: small table, VMEM-resident, one-hot MXU gather.
# ---------------------------------------------------------------------------
def _spk_onehot_kernel(idx_ref, table_ref, o_ref):
    # idx_ref:   (TB, 1)        int32   speaker indices for this tile
    # table_ref: (num_spk, Dp)  full embedding table (VMEM-resident)
    # o_ref:     (TB, Dp)       gathered speaker embeddings
    idx = idx_ref[...]                                           # (TB, 1)
    tb = idx.shape[0]
    num_spk = table_ref.shape[0]
    spk_iota = lax.broadcasted_iota(jnp.int32, (tb, num_spk), 1)
    onehot = (spk_iota == idx).astype(table_ref.dtype)           # (TB, num_spk)
    # Exact gather on the MXU: 1.0 * selected_row + 0.0 * rest.
    o_ref[...] = jnp.dot(onehot, table_ref[...],
                         preferred_element_type=jnp.float32).astype(o_ref.dtype)


def _call_onehot(idx2d, table_p, *, tb, bp, num_spk, d_pad, itemsize,
                 single_buffer_table):
    table_spec_kwargs = {}
    if single_buffer_table:
        # Constant index_map -> a second pipeline buffer for the table would
        # be pure VMEM waste.
        table_spec_kwargs = dict(pipeline_mode=pl.Buffered(1))

    flops = 2 * bp * num_spk * d_pad
    bytes_accessed = (bp * d_pad + num_spk * d_pad) * itemsize + bp * 4

    return pl.pallas_call(
        _spk_onehot_kernel,
        out_shape=jax.ShapeDtypeStruct((bp, d_pad), table_p.dtype),
        grid_spec=pltpu.PrefetchScalarGridSpec(
            num_scalar_prefetch=0,
            grid=(bp // tb,),
            in_specs=[
                # Per-tile indices.
                pl.BlockSpec((tb, 1), lambda i: (i, 0)),
                # Full table, constant index_map -> fetched once, stays
                # resident across grid steps.
                pl.BlockSpec((num_spk, d_pad), lambda i: (0, 0),
                             **table_spec_kwargs),
            ],
            out_specs=pl.BlockSpec((tb, d_pad), lambda i: (i, 0)),
        ),
        compiler_params=pltpu.CompilerParams(
            dimension_semantics=("parallel",),
            vmem_limit_bytes=32 * 1024 * 1024),
        cost_estimate=pl.CostEstimate(flops=flops, transcendentals=0,
                                      bytes_accessed=bytes_accessed),
    )(idx2d, table_p)


def _onehot_path(flat_idx, table_p, b, num_spk, d_pad, itemsize,
                 tile_b, vmem_budget_bytes):
    bp_full = _round_up(b, _SUBLANE)

    # Large tiles to amortize per-grid-step overhead; multiple of 8 sublanes.
    tb = min(max(_SUBLANE, _round_up(tile_b, _SUBLANE)), bp_full)
    # Ensure >= 2 grid steps when the batch allows it so v7x's two TensorCores
    # can each take a share of the "parallel" axis (harmless on v5e/v6e).
    if bp_full >= 2 * _SUBLANE:
        tb = min(tb, _round_up(pl.cdiv(bp_full, 2), _SUBLANE))

    def working_set(tb_):
        out_b = 2 * tb_ * d_pad * itemsize        # double-buffered output tile
        idx_b = 2 * tb_ * 4                       # double-buffered index tile
        tab_b = 2 * num_spk * d_pad * itemsize    # table (pessimistic 2x)
        hot_b = tb_ * num_spk * 4                 # one-hot intermediate (f32)
        return out_b + idx_b + tab_b + hot_b

    # Shrink the batch tile until the working set fits the (conservative,
    # v5e-safe) VMEM budget.
    while tb > _SUBLANE and working_set(tb) > vmem_budget_bytes:
        tb = max(_SUBLANE, _round_up(tb // 2, _SUBLANE))

    bp = _round_up(b, tb)
    if bp != b:
        # Pad with index 0 (always in range); padded rows are sliced off below.
        flat_idx = jnp.pad(flat_idx, (0, bp - b))
    idx2d = flat_idx.reshape(bp, 1)

    try:
        out = _call_onehot(idx2d, table_p, tb=tb, bp=bp, num_spk=num_spk,
                           d_pad=d_pad, itemsize=itemsize,
                           single_buffer_table=True)
    except Exception:
        # Fallback for JAX versions without BlockSpec pipeline_mode support.
        out = _call_onehot(idx2d, table_p, tb=tb, bp=bp, num_spk=num_spk,
                           d_pad=d_pad, itemsize=itemsize,
                           single_buffer_table=False)
    return out[:b]


# ---------------------------------------------------------------------------
# Path B: large table, HBM-resident, scalar-prefetched pl.Element row gather.
# ---------------------------------------------------------------------------
def _spk_gather_kernel(idx_sm_ref, row_ref, o_ref):
    # idx_sm_ref: (B,) int32 in SMEM -- consumed by the index_maps only.
    # row_ref:    (1, 1, Dp)  the gathered table row for this grid step.
    # o_ref:      (1, 1, Dp)
    del idx_sm_ref
    o_ref[...] = row_ref[...]


def _gather_path(flat_idx, table_p, b, num_spk, d_pad, itemsize):
    # Table never becomes VMEM-resident: each grid step DMAs exactly one
    # (1, Dp) row selected by the scalar-prefetched index.
    table3 = table_p.reshape(num_spk, 1, d_pad)
    bytes_accessed = 2 * b * d_pad * itemsize + b * 4

    out = pl.pallas_call(
        _spk_gather_kernel,
        out_shape=jax.ShapeDtypeStruct((b, 1, d_pad), table_p.dtype),
        grid_spec=pltpu.PrefetchScalarGridSpec(
            num_scalar_prefetch=1,
            grid=(b,),
            in_specs=[
                pl.BlockSpec((pl.Element(1), 1, d_pad),
                             lambda i, idx_ref: (idx_ref[i], 0, 0)),
            ],
            out_specs=pl.BlockSpec((1, 1, d_pad),
                                   lambda i, idx_ref: (i, 0, 0)),
        ),
        compiler_params=pltpu.CompilerParams(
            dimension_semantics=("arbitrary",),
            vmem_limit_bytes=32 * 1024 * 1024),
        cost_estimate=pl.CostEstimate(flops=0, transcendentals=0,
                                      bytes_accessed=bytes_accessed),
    )(flat_idx, table3)
    return out.reshape(b, d_pad)


# ---------------------------------------------------------------------------
# Public wrapper.
# ---------------------------------------------------------------------------
def spk_embedding_forward(spk_inds, table, *, tile_b=1024,
                          vmem_budget_bytes=16 * 1024 * 1024,
                          table_vmem_budget_bytes=8 * 1024 * 1024,
                          max_onehot_spk=1024):
    """Embedding lookup.

    spk_inds: integer array of shape (...,)
    table:    (num_spk, embd_dim) float table
    returns:  (..., embd_dim)  ==  table[spk_inds]
    """
    num_spk, embd_dim = table.shape
    orig_shape = spk_inds.shape
    flat = spk_inds.reshape(-1).astype(jnp.int32)
    b = flat.shape[0]
    itemsize = jnp.dtype(table.dtype).itemsize

    # Lane-dense embedding dim: pad columns to a multiple of 128 so stores are
    # unmasked; padded columns are zero and sliced off below.
    d_pad = _round_up(embd_dim, _LANE)
    table_p = table if d_pad == embd_dim else jnp.pad(
        table, ((0, 0), (0, d_pad - embd_dim)))

    table_bytes_2buf = 2 * num_spk * d_pad * itemsize  # pessimistic (2 buffers)
    use_resident_onehot = (num_spk <= max_onehot_spk and
                           table_bytes_2buf <= table_vmem_budget_bytes)

    if use_resident_onehot:
        out = _onehot_path(flat, table_p, b, num_spk, d_pad, itemsize,
                           tile_b, vmem_budget_bytes)
    else:
        out = _gather_path(flat, table_p, b, num_spk, d_pad, itemsize)

    out = out[:, :embd_dim]
    return out.reshape(*orig_shape, embd_dim)


def init_params(key, num_spk, embd_dim, dtype=jnp.float32):
    """Matches nn.Embedding default init: N(0, 1)."""
    return jax.random.normal(key, (num_spk, embd_dim), dtype)


if __name__ == "__main__":
    key = jax.random.PRNGKey(0)
    num_spk, embd_dim = 16, 256
    batch = 10                        # non-multiple of tile -> exercises padding

    k_tbl, k_idx = jax.random.split(key)
    table = init_params(k_tbl, num_spk, embd_dim)
    spk_inds = jax.random.randint(k_idx, (batch,), 0, num_spk, dtype=jnp.int32)
    ref = jnp.take(table, spk_inds, axis=0)

    # Path A: resident table + one-hot MXU gather (default tile_b=1024; the
    # >=2-grid-steps cap kicks in, giving grid=(2,) at this small batch).
    y = jax.block_until_ready(spk_embedding_forward(spk_inds, table))
    assert y.shape == (batch, embd_dim)
    assert jnp.allclose(y, ref, atol=1e-6, rtol=1e-6)

    # Path A with a non-lane-dense embd_dim (column padding + slice).
    embd_dim2 = 200
    table2 = init_params(k_tbl, num_spk, embd_dim2)
    y2 = jax.block_until_ready(spk_embedding_forward(spk_inds, table2))
    assert y2.shape == (batch, embd_dim2)
    assert jnp.allclose(y2, jnp.take(table2, spk_inds, axis=0),
                        atol=1e-6, rtol=1e-6)

    # Path B: force the large-table DMA row-gather path at small shapes.
    y3 = jax.block_until_ready(
        spk_embedding_forward(spk_inds, table, table_vmem_budget_bytes=0))
    assert y3.shape == (batch, embd_dim)
    assert jnp.allclose(y3, ref, atol=1e-6, rtol=1e-6)

    print("KERNEL_OK")
</pallas_src>

<mosaic_0001>
module attributes {stable_mosaic.version = 11 : i64} {
  func.func @_spk_onehot_kernel(%arg0: i32, %arg1: memref<8x1xi32, #tpu.memory_space<vmem>>, %arg2: memref<16x256xf32, #tpu.memory_space<vmem>>, %arg3: memref<8x256xf32, #tpu.memory_space<vmem>>) attributes {dimension_semantics = [#tpu.dimension_semantics<parallel>], iteration_bounds = array<i64: 2>, scalar_prefetch = 0 : i64, scratch_operands = 0 : i64, tpu.core_type = #tpu.core_type<tc>, window_params = [{transform_indices = @transform_0, window_bounds = array<i64: 8, 1>}, {pipeline_mode = #tpu.pipeline_mode<synchronous>, transform_indices = @transform_1, window_bounds = array<i64: 16, 256>}, {transform_indices = @transform_2, window_bounds = array<i64: 8, 256>}]} {
    %c0 = arith.constant 0 : index
    %c0_0 = arith.constant 0 : index
    %0 = vector.load %arg1[%c0, %c0_0] : memref<8x1xi32, #tpu.memory_space<vmem>>, vector<8x1xi32>
    %1 = tpu.iota {dimensions = array<i32: 1>} : vector<8x16xi32>
    %2 = vector.broadcast %0 : vector<8x1xi32> to vector<8x16xi32>
    %3 = arith.cmpi eq, %1, %2 : vector<8x16xi32>
    %4 = arith.extui %3 : vector<8x16xi1> to vector<8x16xi32>
    %5 = arith.sitofp %4 : vector<8x16xi32> to vector<8x16xf32>
    %c0_1 = arith.constant 0 : index
    %c0_2 = arith.constant 0 : index
    %6 = vector.load %arg2[%c0_1, %c0_2] : memref<16x256xf32, #tpu.memory_space<vmem>>, vector<16x256xf32>
    %cst = arith.constant dense<0.000000e+00> : vector<8x256xf32>
    %7 = tpu.matmul %5, %6, %cst {dimension_numbers = #tpu.dot_dimension_numbers<[1], [0], [0], [1], [0, 0, 1, 1], [], []>} : vector<8x16xf32>, vector<16x256xf32>, vector<8x256xf32> -> vector<8x256xf32>
    %c0_3 = arith.constant 0 : index
    %c0_4 = arith.constant 0 : index
    %8 = vector.load %arg3[%c0_3, %c0_4] : memref<8x256xf32, #tpu.memory_space<vmem>>, vector<8x256xf32>
    tpu.vector_store %arg3[%c0_3, %c0_4], %7 {strides = array<i32>} : memref<8x256xf32, #tpu.memory_space<vmem>>, vector<8x256xf32>,
    return
  }
  func.func @transform_0(%arg0: i32) -> (i32, i32) {
    %c0_i32 = arith.constant 0 : i32
    %c0_i32_0 = arith.constant 0 : i32
    return %arg0, %c0_i32 : i32, i32
  }
  func.func @transform_1(%arg0: i32) -> (i32, i32) {
    %c0_i32 = arith.constant 0 : i32
    %c0_i32_0 = arith.constant 0 : i32
    %c0_i32_1 = arith.constant 0 : i32
    return %c0_i32, %c0_i32_0 : i32, i32
  }
  func.func @transform_2(%arg0: i32) -> (i32, i32) {
    %c0_i32 = arith.constant 0 : i32
    %c0_i32_0 = arith.constant 0 : i32
    return %arg0, %c0_i32 : i32, i32
  }
}

module attributes {stable_mosaic.version = 11 : i64} {
  func.func @_spk_onehot_kernel(%arg0: i32, %arg1: memref<8x1xi32, #tpu.memory_space<vmem>>, %arg2: memref<16x256xf32, #tpu.memory_space<vmem>>, %arg3: memref<8x256xf32, #tpu.memory_space<vmem>>) attributes {dimension_semantics = [#tpu.dimension_semantics<parallel>], iteration_bounds = array<i64: 2>, scalar_prefetch = 0 : i64, scratch_operands = 0 : i64, tpu.core_type = #tpu.core_type<tc>, window_params = [{transform_indices = @transform_0, window_bounds = array<i64: 8, 1>}, {pipeline_mode = #tpu.pipeline_mode<synchronous>, transform_indices = @transform_1, window_bounds = array<i64: 16, 256>}, {transform_indices = @transform_2, window_bounds = array<i64: 8, 256>}]} {
    %c0 = arith.constant 0 : index
    %c0_0 = arith.constant 0 : index
    %0 = vector.load %arg1[%c0, %c0_0] : memref<8x1xi32, #tpu.memory_space<vmem>>, vector<8x1xi32>
    %1 = tpu.iota {dimensions = array<i32: 1>} : vector<8x16xi32>
    %2 = vector.broadcast %0 : vector<8x1xi32> to vector<8x16xi32>
    %3 = arith.cmpi eq, %1, %2 : vector<8x16xi32>
    %4 = arith.extui %3 : vector<8x16xi1> to vector<8x16xi32>
    %5 = arith.sitofp %4 : vector<8x16xi32> to vector<8x16xf32>
    %c0_1 = arith.constant 0 : index
    %c0_2 = arith.constant 0 : index
    %6 = vector.load %arg2[%c0_1, %c0_2] : memref<16x256xf32, #tpu.memory_space<vmem>>, vector<16x256xf32>
    %cst = arith.constant dense<0.000000e+00> : vector<8x256xf32>
    %7 = tpu.matmul %5, %6, %cst {dimension_numbers = #tpu.dot_dimension_numbers<[1], [0], [0], [1], [0, 0, 1, 1], [], []>} : vector<8x16xf32>, vector<16x256xf32>, vector<8x256xf32> -> vector<8x256xf32>
    %c0_3 = arith.constant 0 : index
    %c0_4 = arith.constant 0 : index
    %8 = vector.load %arg3[%c0_3, %c0_4] : memref<8x256xf32, #tpu.memory_space<vmem>>, vector<8x256xf32>
    tpu.vector_store %arg3[%c0_3, %c0_4], %7 {strides = array<i32>} : memref<8x256xf32, #tpu.memory_space<vmem>>, vector<8x256xf32>,
    return
  }
  func.func @transform_0(%arg0: i32) -> (i32, i32) {
    %c0_i32 = arith.constant 0 : i32
    %c0_i32_0 = arith.constant 0 : i32
    return %arg0, %c0_i32 : i32, i32
  }
  func.func @transform_1(%arg0: i32) -> (i32, i32) {
    %c0_i32 = arith.constant 0 : i32
    %c0_i32_0 = arith.constant 0 : i32
    %c0_i32_1 = arith.constant 0 : i32
    return %c0_i32, %c0_i32_0 : i32, i32
  }
  func.func @transform_2(%arg0: i32) -> (i32, i32) {
    %c0_i32 = arith.constant 0 : i32
    %c0_i32_0 = arith.constant 0 : i32
    return %arg0, %c0_i32 : i32, i32
  }
}

</mosaic_0001>

<llo_original>
// kernel: tpu_custom_call.1
$region0: #{tpu_custom_call.1}
  #allocation0 [shape = 'u32[]', space=smem, size = 0x4, offset = 0x4, fixed_abs, tag = 'smem constant byte address 0x4 - core index']
  #allocation1 [shape = 'u32[144,128]{1,0:T(1,128)}', space=vmem, size = 0x12000, scoped, tag = 'internal scratch']
  %s0 = inlined_call_operand.vmem [shape: s32[16,1], index: 0, kind: input, shape index: {}]
  %s1 = inlined_call_operand.hbm [shape: f32[16,256], index: 1, kind: input, shape index: {}]
  %s2 = inlined_call_operand.hbm [shape: f32[16,256], index: 2, kind: output, shape index: {}]
  %s3 = sld [smem:[#allocation0]]
  $region45: #{tpu_custom_call.1} parent=0
    _
  %s5 = ssub.s32 1, %s3
  %s6 = scalar_select 0, %s5, %s3
  $region1: #{tpu_custom_call.1} parent=0
    #allocation2 [shape = 'u8[16384]{0}', space=vmem, size = 0x4000, scoped, tag = 'input window, operand 1, single buffered']
    #allocation3 [shape = 's32[2]{0}', space=sflag, size = 0x8, scoped, tag = 'scoped memory for tpu_custom_call.1']
    #allocation4 [shape = 's32[2]{0}', space=sflag, size = 0x8, scoped, tag = 'scoped memory for tpu_custom_call.1']
    #allocation5 [shape = 'u8[16384]{0}', space=vmem, size = 0x4000, scoped, tag = 'output window, operand 0']
    %7 = vsyncpa [#allocation3], 0
    %8 = vsyncpa [#allocation4], 0
    %s9 = scalar_lea.sflag [#allocation4], 1
    %10 = vsyncpa %s9, 0
    loop: start=0, step=1, limit=4
    $region2: #{tpu_custom_call.1} parent=1 // loop_pre_header
      _
    $region3: #{tpu_custom_call.1} parent=1 // loop_header
      %s12 = sphi 0, %s16
      %p13 = scmp.ge.s32.totalorder %s12, 4
      %s22 = sphi 0, %s24
      %s25 = sphi 0, %s22
      %s26 = sphi 0, %s25
      %s42 = sphi 0, %s26
      %s46 = sphi 0, %s46
      %s48 = sphi 0, %s46
      %s49 = sphi 0, %s48
      %s63 = sphi 0, %s49
      %s69 = sphi 0, %s71
      %s72 = sphi 0, %s69
      %s73 = sphi 0, %s72
      %s89 = sphi 0, %s73
    $region4: #{tpu_custom_call.1} parent=1 // loop_header_branch
      %15 = sbr.rel (%p13) target = $region8
    $region5: #{tpu_custom_call.1} parent=1 // loop_body
      %s17 = ssub.s32 %s12, 1
      %s18 = ssub.s32 %s12, 2
      %s19 = sadd.s32 %s12, 1
      %s20 = ssub.s32 %s12, %s19
      %p21 = scmp.eq.s32.totalorder %s20, 0
      %s23 = sadd.s32 %s22, 1
      %s24 = scalar_select %p21, %s22, %s23
      %p27 = pneg %p21
      %p28 = scmp.eq.s32.totalorder %s12, 1
      %p29 = por %p27, %p28
      %p30 = scmp.ne.s32.totalorder %s22, %s25
      %p31 = scmp.eq.s32.totalorder %s12, 0
      %p32 = por %p30, %p31
      %p33 = scmp.ne.s32.totalorder %s22, %s25
      %p34 = scmp.eq.s32.totalorder %s17, 1
      %p35 = por %p33, %p34
      %p36 = scmp.ne.s32.totalorder %s25, %s26
      %p37 = scmp.eq.s32.totalorder %s17, 0
      %p38 = por %p36, %p37
      %p39 = scmp.ne.s32.totalorder %s25, %s26
      %p40 = scmp.eq.s32.totalorder %s18, 1
      %p41 = por %p39, %p40
      %p43 = scmp.ne.s32.totalorder %s26, %s42
      %p44 = scmp.eq.s32.totalorder %s18, 0
      %p45 = por %p43, %p44
      %s47 = sadd.s32 %s46, 1
      %p50 = scmp.eq.s32.totalorder %s12, 1
      %p51 = scmp.ne.s32.totalorder %s46, %s48
      %p52 = scmp.eq.s32.totalorder %s12, 0
      %p53 = por %p51, %p52
      %p54 = scmp.ne.s32.totalorder %s46, %s48
      %p55 = scmp.eq.s32.totalorder %s17, 1
      %p56 = por %p54, %p55
      %p57 = scmp.ne.s32.totalorder %s48, %s49
      %p58 = scmp.eq.s32.totalorder %s17, 0
      %p59 = por %p57, %p58
      %p60 = scmp.ne.s32.totalorder %s48, %s49
      %p61 = scmp.eq.s32.totalorder %s18, 1
      %p62 = por %p60, %p61
      %p64 = scmp.ne.s32.totalorder %s49, %s63
      %p65 = scmp.eq.s32.totalorder %s18, 0
      %p66 = por %p64, %p65
      %s67 = ssub.s32 %s12, %s19
      %p68 = scmp.eq.s32.totalorder %s67, 0
      %s70 = sadd.s32 %s69, 1
      %s71 = scalar_select %p68, %s69, %s70
      %p74 = pneg %p68
      %p75 = scmp.eq.s32.totalorder %s12, 1
      %p76 = por %p74, %p75
      %p77 = scmp.ne.s32.totalorder %s69, %s72
      %p78 = scmp.eq.s32.totalorder %s12, 0
      %p79 = por %p77, %p78
      %p80 = scmp.ne.s32.totalorder %s69, %s72
      %p81 = scmp.eq.s32.totalorder %s17, 1
      %p82 = por %p80, %p81
      %p83 = scmp.ne.s32.totalorder %s72, %s73
      %p84 = scmp.eq.s32.totalorder %s17, 0
      %p85 = por %p83, %p84
      %p86 = scmp.ne.s32.totalorder %s72, %s73
      %p87 = scmp.eq.s32.totalorder %s18, 1
      %p88 = por %p86, %p87
      %p90 = scmp.ne.s32.totalorder %s73, %s89
      %p91 = scmp.eq.s32.totalorder %s18, 0
      %p92 = por %p90, %p91
      %p93 = scmp.le.s32.totalorder 1, %s12
      %p94 = scmp.lt.s32.totalorder %s12, 3
      %p95 = pnand %p93, %p94
      %p96 = pneg %p95
      // Predicated region
      $region9: #{tpu_custom_call.1} parent=5 // pred_check
        _
      $region10: #{tpu_custom_call.1} parent=5 // pred_check_branch
        %98 = sbr.rel (%p95) target = $region12
      $region11: #{tpu_custom_call.1} parent=5 // pred_region
        %s99 = ssub.s32 %s12, 1
        // Predicated region
        $region13: #{tpu_custom_call.1} parent=11 // pred_check
          %p100 = pneg %p59
        $region14: #{tpu_custom_call.1} parent=11 // pred_check_branch
          %102 = sbr.rel (%p100) target = $region16
        $region15: #{tpu_custom_call.1} parent=11 // pred_region
          %s104 = ssub.s32 512, 512
          %105 = vsyncadd [#allocation3], %s104
          %s106 = sshll.u32 [#allocation2], 4
          %s107 = int_to_ptr.vmem [resolvable:$true] %s106
          %112 = dma.hbm_to_vmem [thread:$0]  %s1, 512, %s107, [#allocation3], 256, 256, 16
        $region16: #{tpu_custom_call.1} parent=11 // pred_fallthru
          _
      $region12: #{tpu_custom_call.1} parent=5 // pred_fallthru
        _
      %p113 = scmp.lt.s32.totalorder %s12, 2
      // Predicated region
      $region17: #{tpu_custom_call.1} parent=5 // pred_check
        %p114 = pneg %p113
      $region18: #{tpu_custom_call.1} parent=5 // pred_check_branch
        %116 = sbr.rel (%p114) target = $region20
      $region19: #{tpu_custom_call.1} parent=5 // pred_region
        // Predicated region
        $region21: #{tpu_custom_call.1} parent=19 // pred_check
          %p117 = pneg %p32
        $region22: #{tpu_custom_call.1} parent=19 // pred_check_branch
          %119 = sbr.rel (%p117) target = $region24
        $region23: #{tpu_custom_call.1} parent=19 // pred_region
          %p120 = scmp.lt.s32.totalorder %s12, 1
          %s121 = scalar_select %p120, %s12, 1
          %s122 = smul.addr %s121, 8
          %s123 = scalar_lea.vmem %s0, %s122
        $region24: #{tpu_custom_call.1} parent=19 // pred_fallthru
          _
      $region20: #{tpu_custom_call.1} parent=5 // pred_fallthru
        _
      %p124 = scmp.le.s32.totalorder 1, %s12
      %p125 = scmp.lt.s32.totalorder %s12, 3
      %p126 = pnand %p124, %p125
      %p127 = pneg %p126
      // Predicated region
      $region25: #{tpu_custom_call.1} parent=5 // pred_check
        _
      $region26: #{tpu_custom_call.1} parent=5 // pred_check_branch
        %129 = sbr.rel (%p126) target = $region28
      $region27: #{tpu_custom_call.1} parent=5 // pred_region
        %s130 = ssub.s32 %s12, 1
        // Predicated region
        $region29: #{tpu_custom_call.1} parent=27 // pred_check
          %p131 = pneg %p59
        $region30: #{tpu_custom_call.1} parent=27 // pred_check_branch
          %133 = sbr.rel (%p131) target = $region32
        $region31: #{tpu_custom_call.1} parent=27 // pred_region
          %134 = dma.done [#allocation3], 512
        $region32: #{tpu_custom_call.1} parent=27 // pred_fallthru
          _
        %p135 = scmp.lt.s32.totalorder %s17, 1
        %s136 = scalar_select %p135, %s17, 1
        %s137 = smul.addr %s136, 8
        %s138 = scalar_lea.vmem %s0, %s137
        %p139 = pneg %p38
        %p140 = pneg %p35
        %p141 = pneg %p59
        %p142 = pneg %p56
        %p143 = pneg %p85
        %p144 = pneg %p82
        %s145 = sand.u32 %s72, 1
        %s146 = scalar_lea.sflag [#allocation4], %s145
        %s147 = sand.u32 %s72, 1
        %s148 = smul.addr %s147, 16
        %s149 = scalar_lea.vmem [#allocation5], %s148
        %p150 = scmp.lt.s32.totalorder %s17, 1
        %s151 = scalar_select %p150, %s17, 1
        %s152 = smul.addr %s151, 8
        %s153 = scalar_lea.vmem %s0, %s152
        %v154 = vld [vmem:[%s153] sm:$0xff]
        %v155 = vlaneseq
        %v156 = vand.u32 %v155, 127
        %157 = vset.pattern.permute.xlu0 0
        %158 = vperm.xlu0 %157, %v154
        %v159 = vpop.permute.xlu0 %158
        %vm160 = vcmp.eq.s32.totalorder %v156, %v159
        %v161 = vsel %vm160, 1, 0
        %v162 = vcvt.s32.f32 %v161
        %v163 = vld [vmem:[#allocation2] sm:$0xff]
        %v164 = vld [vmem:[#allocation2 + $0x8] sm:$0xff]
        %v165 = vld [vmem:[#allocation2 + $0x10] sm:$0xff]
        %v166 = vld [vmem:[#allocation2 + $0x18] sm:$0xff]
        %vm167 = vcmask 130048
        %v169 = vsel %vm167, %v162, 0
        %171 = vmatprep.subr.mxu0 %v164
        %172 = vmatpush1.msra.mxu0 %v163
        %173 = vmatprep.subr.mxu0 %v166
        %174 = vmatpush1.msra.mxu0 %v165
        %175 = vmatprep.subr.mxu0 0.0
        %176 = vmatpush1.msra.mxu0 0.0
        %177 = vmatprep.subr.mxu0 0.0
        %178 = vmatpush1.msra.mxu0 0.0
        %179 = vmatprep.subr.mxu0 0.0
        %180 = vmatpush1.msra.mxu0 0.0
        %181 = vmatprep.subr.mxu0 0.0
        %182 = vmatpush1.msra.mxu0 0.0
        %183 = vmatprep.subr.mxu0 0.0
        %184 = vmatpush1.msra.mxu0 0.0
        %185 = vmatprep.subr.mxu0 0.0
        %186 = vmatpush1.msra.mxu0 0.0
        %187 = vmatprep.subr.mxu0 0.0
        %188 = vmatpush1.msra.mxu0 0.0
        %189 = vmatprep.subr.mxu0 0.0
        %190 = vmatpush1.msra.mxu0 0.0
        %191 = vmatprep.subr.mxu0 0.0
        %192 = vmatpush1.msra.mxu0 0.0
        %193 = vmatprep.subr.mxu0 0.0
        %194 = vmatpush1.msra.mxu0 0.0
        %195 = vmatprep.subr.mxu0 0.0
        %196 = vmatpush1.msra.mxu0 0.0
        %197 = vmatprep.subr.mxu0 0.0
        %198 = vmatpush1.msra.mxu0 0.0
        %199 = vmatprep.subr.mxu0 0.0
        %200 = vmatpush1.msra.mxu0 0.0
        %201 = vmatprep.subr.mxu0 0.0
        %202 = vmatpush1.msra.mxu0 0.0
        %203 = vmatprep.subr.mxu0 0.0
        %204 = vmatpush1.msra.mxu0 0.0
        %205 = vmatprep.subr.mxu0 0.0
        %206 = vmatpush1.msra.mxu0 0.0
        %207 = vmatprep.subr.mxu0 0.0
        %208 = vmatpush1.msra.mxu0 0.0
        %209 = vmatprep.subr.mxu0 0.0
        %210 = vmatpush1.msra.mxu0 0.0
        %211 = vmatprep.subr.mxu0 0.0
        %212 = vmatpush1.msra.mxu0 0.0
        %213 = vmatprep.subr.mxu0 0.0
        %214 = vmatpush1.msra.mxu0 0.0
        %215 = vmatprep.subr.mxu0 0.0
        %216 = vmatpush1.msra.mxu0 0.0
        %217 = vmatprep.subr.mxu0 0.0
        %218 = vmatpush1.msra.mxu0 0.0
        %219 = vmatprep.subr.mxu0 0.0
        %220 = vmatpush1.msra.mxu0 0.0
        %221 = vmatprep.subr.mxu0 0.0
        %222 = vmatpush1.msra.mxu0 0.0
        %223 = vmatprep.subr.mxu0 0.0
        %224 = vmatpush1.msra.mxu0 0.0
        %225 = vmatprep.subr.mxu0 0.0
        %226 = vmatpush1.msra.mxu0 0.0
        %227 = vmatprep.subr.mxu0 0.0
        %228 = vmatpush1.msra.mxu0 0.0
        %229 = vmatprep.subr.mxu0 0.0
        %230 = vmatpush1.msra.mxu0 0.0
        %231 = vmatprep.subr.mxu0 0.0
        %232 = vmatpush1.msra.mxu0 0.0
        %233 = vmatprep.subr.mxu0 0.0
        %234 = vmatpush1.msra.mxu0 0.0
        %235 = vmatprep.mubr.f32.mxu0 0.0
        %236 = vmatmul.mubr.f32.gmra.mrb[0].mxu0 %v169
        %v237 = vpop.f32.mrb[0].mxu0
        %v238 = vadd.f32 0.0, %v237
        %v239 = vpop.f32.mrb[0].mxu0
        %v240 = vadd.f32 0.0, %v239
        %241 = vdwg.mxu0
        %242 = vst [vmem:[%s149] sm:$0xff] %v238
        %243 = vst [vmem:[%s149 + $0x8] sm:$0xff] %v240
        %s244 = sand.u32 %s72, 1
        %s245 = scalar_lea.sflag [#allocation4], %s244
        %s246 = sand.u32 %s72, 1
        %s247 = smul.addr %s246, 16
        %s248 = scalar_lea.vmem [#allocation5], %s247
        // Predicated region
        $region33: #{tpu_custom_call.1} parent=27 // pred_check
          %p249 = pneg %p82
        $region34: #{tpu_custom_call.1} parent=27 // pred_check_branch
          %251 = sbr.rel (%p249) target = $region36
        $region35: #{tpu_custom_call.1} parent=27 // pred_region
          %s253 = ssub.s32 256, 256
          %254 = vsyncadd %s245, %s253
          %s255 = smul.addr %s17, 2
          %s256 = smul.addr %s255, 128
          %s257 = scalar_lea.hbm %s2, %s256
          %s259 = sshll.u32 %s248, 4
          %s260 = int_to_ptr.vmem [resolvable:$true] %s259
          %262 = dma.vmem_to_hbm [thread:$0]  %s260, 256, %s257, %s245
        $region36: #{tpu_custom_call.1} parent=27 // pred_fallthru
          _
      $region28: #{tpu_custom_call.1} parent=5 // pred_fallthru
        _
      %p263 = scmp.le.s32.totalorder 2, %s12
      // Predicated region
      $region37: #{tpu_custom_call.1} parent=5 // pred_check
        %p264 = pneg %p263
      $region38: #{tpu_custom_call.1} parent=5 // pred_check_branch
        %266 = sbr.rel (%p264) target = $region40
      $region39: #{tpu_custom_call.1} parent=5 // pred_region
        %s267 = ssub.s32 %s12, 2
        // Predicated region
        $region41: #{tpu_custom_call.1} parent=39 // pred_check
          %p268 = pneg %p88
        $region42: #{tpu_custom_call.1} parent=39 // pred_check_branch
          %270 = sbr.rel (%p268) target = $region44
        $region43: #{tpu_custom_call.1} parent=39 // pred_region
          %s271 = sand.u32 %s73, 1
          %s272 = scalar_lea.sflag [#allocation4], %s271
          %s273 = sand.u32 %s73, 1
          %s274 = smul.addr %s273, 16
          %s275 = scalar_lea.vmem [#allocation5], %s274
          %276 = dma.done %s272, 256
        $region44: #{tpu_custom_call.1} parent=39 // pred_fallthru
          _
      $region40: #{tpu_custom_call.1} parent=5 // pred_fallthru
        _
    $region6: #{tpu_custom_call.1} parent=1 // loop_footer
      %s16 = sadd.s32 1, %s12
    $region7: #{tpu_custom_call.1} parent=1 // loop_footer_branch
      %11 = sbr.rel target = $region3
    $region8: #{tpu_custom_call.1} parent=1 // loop_exit
      _
    %277 = vsyncpa [#allocation3], 1
    %s278 = scalar_lea.sflag [#allocation3], 1
    %279 = vsyncpa %s278, 1
    %280 = vsyncpa [#allocation4], 1
    %s281 = scalar_lea.sflag [#allocation4], 1
    %282 = vsyncpa %s281, 1

// kernel: tpu_custom_call.1
$region0: #{tpu_custom_call.1}
  #allocation0 [shape = 'u32[]', space=smem, size = 0x4, offset = 0x4, fixed_abs, tag = 'smem constant byte address 0x4 - core index']
  #allocation1 [shape = 'u32[144,128]{1,0:T(1,128)}', space=vmem, size = 0x12000, scoped, tag = 'internal scratch']
  %s0 = inlined_call_operand.vmem [shape: s32[16,1], index: 0, kind: input, shape index: {}]
  %s1 = inlined_call_operand.hbm [shape: f32[16,256], index: 1, kind: input, shape index: {}]
  %s2 = inlined_call_operand.hbm [shape: f32[16,256], index: 2, kind: output, shape index: {}]
  %s3 = sld [smem:[#allocation0]]
  $region45: #{tpu_custom_call.1} parent=0
    _
  %s5 = ssub.s32 1, %s3
  %s6 = scalar_select 0, %s5, %s3
  $region1: #{tpu_custom_call.1} parent=0
    #allocation2 [shape = 'u8[16384]{0}', space=vmem, size = 0x4000, scoped, tag = 'input window, operand 1, single buffered']
    #allocation3 [shape = 's32[2]{0}', space=sflag, size = 0x8, scoped, tag = 'scoped memory for tpu_custom_call.1']
    #allocation4 [shape = 's32[2]{0}', space=sflag, size = 0x8, scoped, tag = 'scoped memory for tpu_custom_call.1']
    #allocation5 [shape = 'u8[16384]{0}', space=vmem, size = 0x4000, scoped, tag = 'output window, operand 0']
    %7 = vsyncpa [#allocation3], 0
    %8 = vsyncpa [#allocation4], 0
    %s9 = scalar_lea.sflag [#allocation4], 1
    %10 = vsyncpa %s9, 0
    loop: start=0, step=1, limit=4
    $region2: #{tpu_custom_call.1} parent=1 // loop_pre_header
      _
    $region3: #{tpu_custom_call.1} parent=1 // loop_header
      %s12 = sphi 0, %s16
      %p13 = scmp.ge.s32.totalorder %s12, 4
      %s22 = sphi 0, %s24
      %s25 = sphi 0, %s22
      %s26 = sphi 0, %s25
      %s42 = sphi 0, %s26
      %s46 = sphi 0, %s46
      %s48 = sphi 0, %s46
      %s49 = sphi 0, %s48
      %s63 = sphi 0, %s49
      %s69 = sphi 0, %s71
      %s72 = sphi 0, %s69
      %s73 = sphi 0, %s72
      %s89 = sphi 0, %s73
    $region4: #{tpu_custom_call.1} parent=1 // loop_header_branch
      %15 = sbr.rel (%p13) target = $region8
    $region5: #{tpu_custom_call.1} parent=1 // loop_body
      %s17 = ssub.s32 %s12, 1
      %s18 = ssub.s32 %s12, 2
      %s19 = sadd.s32 %s12, 1
      %s20 = ssub.s32 %s12, %s19
      %p21 = scmp.eq.s32.totalorder %s20, 0
      %s23 = sadd.s32 %s22, 1
      %s24 = scalar_select %p21, %s22, %s23
      %p27 = pneg %p21
      %p28 = scmp.eq.s32.totalorder %s12, 1
      %p29 = por %p27, %p28
      %p30 = scmp.ne.s32.totalorder %s22, %s25
      %p31 = scmp.eq.s32.totalorder %s12, 0
      %p32 = por %p30, %p31
      %p33 = scmp.ne.s32.totalorder %s22, %s25
      %p34 = scmp.eq.s32.totalorder %s17, 1
      %p35 = por %p33, %p34
      %p36 = scmp.ne.s32.totalorder %s25, %s26
      %p37 = scmp.eq.s32.totalorder %s17, 0
      %p38 = por %p36, %p37
      %p39 = scmp.ne.s32.totalorder %s25, %s26
      %p40 = scmp.eq.s32.totalorder %s18, 1
      %p41 = por %p39, %p40
      %p43 = scmp.ne.s32.totalorder %s26, %s42
      %p44 = scmp.eq.s32.totalorder %s18, 0
      %p45 = por %p43, %p44
      %s47 = sadd.s32 %s46, 1
      %p50 = scmp.eq.s32.totalorder %s12, 1
      %p51 = scmp.ne.s32.totalorder %s46, %s48
      %p52 = scmp.eq.s32.totalorder %s12, 0
      %p53 = por %p51, %p52
      %p54 = scmp.ne.s32.totalorder %s46, %s48
      %p55 = scmp.eq.s32.totalorder %s17, 1
      %p56 = por %p54, %p55
      %p57 = scmp.ne.s32.totalorder %s48, %s49
      %p58 = scmp.eq.s32.totalorder %s17, 0
      %p59 = por %p57, %p58
      %p60 = scmp.ne.s32.totalorder %s48, %s49
      %p61 = scmp.eq.s32.totalorder %s18, 1
      %p62 = por %p60, %p61
      %p64 = scmp.ne.s32.totalorder %s49, %s63
      %p65 = scmp.eq.s32.totalorder %s18, 0
      %p66 = por %p64, %p65
      %s67 = ssub.s32 %s12, %s19
      %p68 = scmp.eq.s32.totalorder %s67, 0
      %s70 = sadd.s32 %s69, 1
      %s71 = scalar_select %p68, %s69, %s70
      %p74 = pneg %p68
      %p75 = scmp.eq.s32.totalorder %s12, 1
      %p76 = por %p74, %p75
      %p77 = scmp.ne.s32.totalorder %s69, %s72
      %p78 = scmp.eq.s32.totalorder %s12, 0
      %p79 = por %p77, %p78
      %p80 = scmp.ne.s32.totalorder %s69, %s72
      %p81 = scmp.eq.s32.totalorder %s17, 1
      %p82 = por %p80, %p81
      %p83 = scmp.ne.s32.totalorder %s72, %s73
      %p84 = scmp.eq.s32.totalorder %s17, 0
      %p85 = por %p83, %p84
      %p86 = scmp.ne.s32.totalorder %s72, %s73
      %p87 = scmp.eq.s32.totalorder %s18, 1
      %p88 = por %p86, %p87
      %p90 = scmp.ne.s32.totalorder %s73, %s89
      %p91 = scmp.eq.s32.totalorder %s18, 0
      %p92 = por %p90, %p91
      %p93 = scmp.le.s32.totalorder 1, %s12
      %p94 = scmp.lt.s32.totalorder %s12, 3
      %p95 = pnand %p93, %p94
      %p96 = pneg %p95
      // Predicated region
      $region9: #{tpu_custom_call.1} parent=5 // pred_check
        _
      $region10: #{tpu_custom_call.1} parent=5 // pred_check_branch
        %98 = sbr.rel (%p95) target = $region12
      $region11: #{tpu_custom_call.1} parent=5 // pred_region
        %s99 = ssub.s32 %s12, 1
        // Predicated region
        $region13: #{tpu_custom_call.1} parent=11 // pred_check
          %p100 = pneg %p59
        $region14: #{tpu_custom_call.1} parent=11 // pred_check_branch
          %102 = sbr.rel (%p100) target = $region16
        $region15: #{tpu_custom_call.1} parent=11 // pred_region
          %s104 = ssub.s32 512, 512
          %105 = vsyncadd [#allocation3], %s104
          %s106 = sshll.u32 [#allocation2], 4
          %s107 = int_to_ptr.vmem [resolvable:$true] %s106
          %112 = dma.hbm_to_vmem [thread:$0]  %s1, 512, %s107, [#allocation3], 256, 256, 16
        $region16: #{tpu_custom_call.1} parent=11 // pred_fallthru
          _
      $region12: #{tpu_custom_call.1} parent=5 // pred_fallthru
        _
      %p113 = scmp.lt.s32.totalorder %s12, 2
      // Predicated region
      $region17: #{tpu_custom_call.1} parent=5 // pred_check
        %p114 = pneg %p113
      $region18: #{tpu_custom_call.1} parent=5 // pred_check_branch
        %116 = sbr.rel (%p114) target = $region20
      $region19: #{tpu_custom_call.1} parent=5 // pred_region
        // Predicated region
        $region21: #{tpu_custom_call.1} parent=19 // pred_check
          %p117 = pneg %p32
        $region22: #{tpu_custom_call.1} parent=19 // pred_check_branch
          %119 = sbr.rel (%p117) target = $region24
        $region23: #{tpu_custom_call.1} parent=19 // pred_region
          %p120 = scmp.lt.s32.totalorder %s12, 1
          %s121 = scalar_select %p120, %s12, 1
          %s122 = smul.addr %s121, 8
          %s123 = scalar_lea.vmem %s0, %s122
        $region24: #{tpu_custom_call.1} parent=19 // pred_fallthru
          _
      $region20: #{tpu_custom_call.1} parent=5 // pred_fallthru
        _
      %p124 = scmp.le.s32.totalorder 1, %s12
      %p125 = scmp.lt.s32.totalorder %s12, 3
      %p126 = pnand %p124, %p125
      %p127 = pneg %p126
      // Predicated region
      $region25: #{tpu_custom_call.1} parent=5 // pred_check
        _
      $region26: #{tpu_custom_call.1} parent=5 // pred_check_branch
        %129 = sbr.rel (%p126) target = $region28
      $region27: #{tpu_custom_call.1} parent=5 // pred_region
        %s130 = ssub.s32 %s12, 1
        // Predicated region
        $region29: #{tpu_custom_call.1} parent=27 // pred_check
          %p131 = pneg %p59
        $region30: #{tpu_custom_call.1} parent=27 // pred_check_branch
          %133 = sbr.rel (%p131) target = $region32
        $region31: #{tpu_custom_call.1} parent=27 // pred_region
          %134 = dma.done [#allocation3], 512
        $region32: #{tpu_custom_call.1} parent=27 // pred_fallthru
          _
        %p135 = scmp.lt.s32.totalorder %s17, 1
        %s136 = scalar_select %p135, %s17, 1
        %s137 = smul.addr %s136, 8
        %s138 = scalar_lea.vmem %s0, %s137
        %p139 = pneg %p38
        %p140 = pneg %p35
        %p141 = pneg %p59
        %p142 = pneg %p56
        %p143 = pneg %p85
        %p144 = pneg %p82
        %s145 = sand.u32 %s72, 1
        %s146 = scalar_lea.sflag [#allocation4], %s145
        %s147 = sand.u32 %s72, 1
        %s148 = smul.addr %s147, 16
        %s149 = scalar_lea.vmem [#allocation5], %s148
        %p150 = scmp.lt.s32.totalorder %s17, 1
        %s151 = scalar_select %p150, %s17, 1
        %s152 = smul.addr %s151, 8
        %s153 = scalar_lea.vmem %s0, %s152
        %v154 = vld [vmem:[%s153] sm:$0xff]
        %v155 = vlaneseq
        %v156 = vand.u32 %v155, 127
        %157 = vset.pattern.permute.xlu0 0
        %158 = vperm.xlu0 %157, %v154
        %v159 = vpop.permute.xlu0 %158
        %vm160 = vcmp.eq.s32.totalorder %v156, %v159
        %v161 = vsel %vm160, 1, 0
        %v162 = vcvt.s32.f32 %v161
        %v163 = vld [vmem:[#allocation2] sm:$0xff]
        %v164 = vld [vmem:[#allocation2 + $0x8] sm:$0xff]
        %v165 = vld [vmem:[#allocation2 + $0x10] sm:$0xff]
        %v166 = vld [vmem:[#allocation2 + $0x18] sm:$0xff]
        %vm167 = vcmask 130048
        %v169 = vsel %vm167, %v162, 0
        %171 = vmatprep.subr.mxu0 %v164
        %172 = vmatpush1.msra.mxu0 %v163
        %173 = vmatprep.subr.mxu0 %v166
        %174 = vmatpush1.msra.mxu0 %v165
        %175 = vmatprep.subr.mxu0 0.0
        %176 = vmatpush1.msra.mxu0 0.0
        %177 = vmatprep.subr.mxu0 0.0
        %178 = vmatpush1.msra.mxu0 0.0
        %179 = vmatprep.subr.mxu0 0.0
        %180 = vmatpush1.msra.mxu0 0.0
        %181 = vmatprep.subr.mxu0 0.0
        %182 = vmatpush1.msra.mxu0 0.0
        %183 = vmatprep.subr.mxu0 0.0
        %184 = vmatpush1.msra.mxu0 0.0
        %185 = vmatprep.subr.mxu0 0.0
        %186 = vmatpush1.msra.mxu0 0.0
        %187 = vmatprep.subr.mxu0 0.0
        %188 = vmatpush1.msra.mxu0 0.0
        %189 = vmatprep.subr.mxu0 0.0
        %190 = vmatpush1.msra.mxu0 0.0
        %191 = vmatprep.subr.mxu0 0.0
        %192 = vmatpush1.msra.mxu0 0.0
        %193 = vmatprep.subr.mxu0 0.0
        %194 = vmatpush1.msra.mxu0 0.0
        %195 = vmatprep.subr.mxu0 0.0
        %196 = vmatpush1.msra.mxu0 0.0
        %197 = vmatprep.subr.mxu0 0.0
        %198 = vmatpush1.msra.mxu0 0.0
        %199 = vmatprep.subr.mxu0 0.0
        %200 = vmatpush1.msra.mxu0 0.0
        %201 = vmatprep.subr.mxu0 0.0
        %202 = vmatpush1.msra.mxu0 0.0
        %203 = vmatprep.subr.mxu0 0.0
        %204 = vmatpush1.msra.mxu0 0.0
        %205 = vmatprep.subr.mxu0 0.0
        %206 = vmatpush1.msra.mxu0 0.0
        %207 = vmatprep.subr.mxu0 0.0
        %208 = vmatpush1.msra.mxu0 0.0
        %209 = vmatprep.subr.mxu0 0.0
        %210 = vmatpush1.msra.mxu0 0.0
        %211 = vmatprep.subr.mxu0 0.0
        %212 = vmatpush1.msra.mxu0 0.0
        %213 = vmatprep.subr.mxu0 0.0
        %214 = vmatpush1.msra.mxu0 0.0
        %215 = vmatprep.subr.mxu0 0.0
        %216 = vmatpush1.msra.mxu0 0.0
        %217 = vmatprep.subr.mxu0 0.0
        %218 = vmatpush1.msra.mxu0 0.0
        %219 = vmatprep.subr.mxu0 0.0
        %220 = vmatpush1.msra.mxu0 0.0
        %221 = vmatprep.subr.mxu0 0.0
        %222 = vmatpush1.msra.mxu0 0.0
        %223 = vmatprep.subr.mxu0 0.0
        %224 = vmatpush1.msra.mxu0 0.0
        %225 = vmatprep.subr.mxu0 0.0
        %226 = vmatpush1.msra.mxu0 0.0
        %227 = vmatprep.subr.mxu0 0.0
        %228 = vmatpush1.msra.mxu0 0.0
        %229 = vmatprep.subr.mxu0 0.0
        %230 = vmatpush1.msra.mxu0 0.0
        %231 = vmatprep.subr.mxu0 0.0
        %232 = vmatpush1.msra.mxu0 0.0
        %233 = vmatprep.subr.mxu0 0.0
        %234 = vmatpush1.msra.mxu0 0.0
        %235 = vmatprep.mubr.f32.mxu0 0.0
        %236 = vmatmul.mubr.f32.gmra.mrb[0].mxu0 %v169
        %v237 = vpop.f32.mrb[0].mxu0
        %v238 = vadd.f32 0.0, %v237
        %v239 = vpop.f32.mrb[0].mxu0
        %v240 = vadd.f32 0.0, %v239
        %241 = vdwg.mxu0
        %242 = vst [vmem:[%s149] sm:$0xff] %v238
        %243 = vst [vmem:[%s149 + $0x8] sm:$0xff] %v240
        %s244 = sand.u32 %s72, 1
        %s245 = scalar_lea.sflag [#allocation4], %s244
        %s246 = sand.u32 %s72, 1
        %s247 = smul.addr %s246, 16
        %s248 = scalar_lea.vmem [#allocation5], %s247
        // Predicated region
        $region33: #{tpu_custom_call.1} parent=27 // pred_check
          %p249 = pneg %p82
        $region34: #{tpu_custom_call.1} parent=27 // pred_check_branch
          %251 = sbr.rel (%p249) target = $region36
        $region35: #{tpu_custom_call.1} parent=27 // pred_region
          %s253 = ssub.s32 256, 256
          %254 = vsyncadd %s245, %s253
          %s255 = smul.addr %s17, 2
          %s256 = smul.addr %s255, 128
          %s257 = scalar_lea.hbm %s2, %s256
          %s259 = sshll.u32 %s248, 4
          %s260 = int_to_ptr.vmem [resolvable:$true] %s259
          %262 = dma.vmem_to_hbm [thread:$0]  %s260, 256, %s257, %s245
        $region36: #{tpu_custom_call.1} parent=27 // pred_fallthru
          _
      $region28: #{tpu_custom_call.1} parent=5 // pred_fallthru
        _
      %p263 = scmp.le.s32.totalorder 2, %s12
      // Predicated region
      $region37: #{tpu_custom_call.1} parent=5 // pred_check
        %p264 = pneg %p263
      $region38: #{tpu_custom_call.1} parent=5 // pred_check_branch
        %266 = sbr.rel (%p264) target = $region40
      $region39: #{tpu_custom_call.1} parent=5 // pred_region
        %s267 = ssub.s32 %s12, 2
        // Predicated region
        $region41: #{tpu_custom_call.1} parent=39 // pred_check
          %p268 = pneg %p88
        $region42: #{tpu_custom_call.1} parent=39 // pred_check_branch
          %270 = sbr.rel (%p268) target = $region44
        $region43: #{tpu_custom_call.1} parent=39 // pred_region
          %s271 = sand.u32 %s73, 1
          %s272 = scalar_lea.sflag [#allocation4], %s271
          %s273 = sand.u32 %s73, 1
          %s274 = smul.addr %s273, 16
          %s275 = scalar_lea.vmem [#allocation5], %s274
          %276 = dma.done %s272, 256
        $region44: #{tpu_custom_call.1} parent=39 // pred_fallthru
          _
      $region40: #{tpu_custom_call.1} parent=5 // pred_fallthru
        _
    $region6: #{tpu_custom_call.1} parent=1 // loop_footer
      %s16 = sadd.s32 1, %s12
    $region7: #{tpu_custom_call.1} parent=1 // loop_footer_branch
      %11 = sbr.rel target = $region3
    $region8: #{tpu_custom_call.1} parent=1 // loop_exit
      _
    %277 = vsyncpa [#allocation3], 1
    %s278 = scalar_lea.sflag [#allocation3], 1
    %279 = vsyncpa %s278, 1
    %280 = vsyncpa [#allocation4], 1
    %s281 = scalar_lea.sflag [#allocation4], 1
    %282 = vsyncpa %s281, 1

</llo_original>
